<compile_context>
chip_gen: v6e
topology: v6e:2x2x1
jax: 0.10.0
libtpu: 0.0.40
codegen_flags: <defaults>
</compile_context>

<pallas_src>
import jax
import jax.numpy as jnp
from jax.experimental import pallas as pl
from jax.experimental.pallas import tpu as pltpu


def _round_up(n, m):
    return ((n + m - 1) // m) * m


# ----------------------------------------------------------------------------
# Pallas kernels
# ----------------------------------------------------------------------------
def _mlp_full_kernel(x_ref, w1_ref, b1_ref, w2_ref, b2_ref, h_ref, y_ref):
    # fc1: bf16 MXU matmul, f32 accumulate, f32 bias.
    x = x_ref[...].astype(jnp.bfloat16)
    z = jnp.dot(x, w1_ref[...], preferred_element_type=jnp.float32) + b1_ref[...]
    # Exact sigmoid via a single EUP tanh push per element.
    h = 0.5 * jnp.tanh(0.5 * z) + 0.5
    h_ref[...] = h
    # fc2: bf16 MXU matmul, f32 accumulate, f32 bias.
    y = jnp.dot(h.astype(jnp.bfloat16), w2_ref[...],
                preferred_element_type=jnp.float32) + b2_ref[...]
    y_ref[...] = y
    # TODO(synk): optionally fuse the recon-MSE partial reduction here
    # (sum((y - x)^2) per tile with pad-row masking) to drop the y writeback.


def _mlp_h_only_kernel(x_ref, w1_ref, b1_ref, h_ref):
    x = x_ref[...].astype(jnp.bfloat16)
    z = jnp.dot(x, w1_ref[...], preferred_element_type=jnp.float32) + b1_ref[...]
    h_ref[...] = 0.5 * jnp.tanh(0.5 * z) + 0.5


# ----------------------------------------------------------------------------
# Wrapper: two_layer_mlp.forward
# ----------------------------------------------------------------------------
def two_layer_mlp_pallas(x, params, *, need_recon=True, tile_m_cap=512):
    """Pallas implementation of two_layer_mlp.forward.

    x: (N, D) float32.  Returns (h (N,128) f32, y (N,D) f32) when need_recon,
    else (h, None), matching the PyTorch forward (up to bf16 matmul-operand
    rounding).
    """
    N, D = x.shape
    w1 = params["w1_bf16"]
    w2 = params["w2_bf16"]
    b1_2d = params["b1_2d"]
    b2_2d = params["b2_2d"]
    H = w1.shape[1]
    assert w1.shape == (D, H) and w2.shape == (H, D)

    if N <= tile_m_cap:
        # Small batch (phase-1 hot path: N = 60 / 120): single grid step, block
        # equals the full array -> no (8,128) divisibility requirement, no
        # padding copies, no wasted MXU FLOPs or DMA.
        tile_m = N
        n_pad = N
        grid = (1,)
        semantics = ("arbitrary",)
        x_p = x
    else:
        # Large batch: tile the rows; each step carries >= tile_m_cap real rows
        # so splitting across v7x's two TensorCores pays off.
        tile_m = tile_m_cap
        n_pad = _round_up(N, tile_m)
        grid = (n_pad // tile_m,)
        semantics = ("parallel",)
        x_p = jnp.zeros((n_pad, D), x.dtype).at[:N].set(x)
        # VMEM worst case (tile_m=512, D=768): ~8 MiB double-buffered, well under
        # the 32 MiB scoped default on v5e/v6e/v7x.

    x_bytes = n_pad * D * x_p.dtype.itemsize
    w1_bytes = D * H * 2
    b_bytes = (H + D) * 4
    h_bytes = n_pad * H * 4

    if need_recon:
        flops = 2 * n_pad * (D * H + H * D)
        bytes_accessed = x_bytes + w1_bytes + H * D * 2 + b_bytes + h_bytes + n_pad * D * 4
        h_out, y_out = pl.pallas_call(
            _mlp_full_kernel,
            out_shape=(
                jax.ShapeDtypeStruct((n_pad, H), jnp.float32),
                jax.ShapeDtypeStruct((n_pad, D), jnp.float32),
            ),
            grid_spec=pltpu.PrefetchScalarGridSpec(
                num_scalar_prefetch=0,
                grid=grid,
                in_specs=[
                    pl.BlockSpec((tile_m, D), lambda i: (i, 0)),  # x tile (f32)
                    pl.BlockSpec((D, H), lambda i: (0, 0)),       # W1 (bf16, resident)
                    pl.BlockSpec((1, H), lambda i: (0, 0)),       # b1
                    pl.BlockSpec((H, D), lambda i: (0, 0)),       # W2 (bf16, resident)
                    pl.BlockSpec((1, D), lambda i: (0, 0)),       # b2
                ],
                out_specs=[
                    pl.BlockSpec((tile_m, H), lambda i: (i, 0)),
                    pl.BlockSpec((tile_m, D), lambda i: (i, 0)),
                ],
            ),
            compiler_params=pltpu.CompilerParams(dimension_semantics=semantics),
            cost_estimate=pl.CostEstimate(
                flops=flops, transcendentals=n_pad * H, bytes_accessed=bytes_accessed),
        )(x_p, w1, b1_2d, w2, b2_2d)
        if n_pad != N:
            h_out = h_out[:N]
            y_out = y_out[:N]
        return h_out, y_out

    # h-only path: skip fc2 and the y output entirely (XLA cannot DCE inside a
    # pallas_call, so this must be a separate kernel).
    flops = 2 * n_pad * D * H
    bytes_accessed = x_bytes + w1_bytes + H * 4 + h_bytes
    h_out = pl.pallas_call(
        _mlp_h_only_kernel,
        out_shape=jax.ShapeDtypeStruct((n_pad, H), jnp.float32),
        grid_spec=pltpu.PrefetchScalarGridSpec(
            num_scalar_prefetch=0,
            grid=grid,
            in_specs=[
                pl.BlockSpec((tile_m, D), lambda i: (i, 0)),  # x tile (f32)
                pl.BlockSpec((D, H), lambda i: (0, 0)),       # W1 (bf16, resident)
                pl.BlockSpec((1, H), lambda i: (0, 0)),       # b1
            ],
            out_specs=pl.BlockSpec((tile_m, H), lambda i: (i, 0)),
        ),
        compiler_params=pltpu.CompilerParams(dimension_semantics=semantics),
        cost_estimate=pl.CostEstimate(
            flops=flops, transcendentals=n_pad * H, bytes_accessed=bytes_accessed),
    )(x_p, w1, b1_2d)
    if n_pad != N:
        h_out = h_out[:N]
    return h_out, None


# ----------------------------------------------------------------------------
# Parameter construction (deterministic, in-script; mimics nn.Linear shapes).
# The bf16 weight cast / bias reshape is done ONCE here, not per kernel call.
# ----------------------------------------------------------------------------
def make_two_layer_mlp_params(key, dims, hidden=128, scale=0.02):
    k1, k2, k3, k4 = jax.random.split(key, 4)
    w1 = scale * jax.random.normal(k1, (dims, hidden), jnp.float32)
    b1 = scale * jax.random.normal(k2, (hidden,), jnp.float32)
    w2 = scale * jax.random.normal(k3, (hidden, dims), jnp.float32)
    b2 = scale * jax.random.normal(k4, (dims,), jnp.float32)
    return dict(
        w1=w1, b1=b1, w2=w2, b2=b2,                 # f32 masters (reference / optimizer)
        w1_bf16=w1.astype(jnp.bfloat16),            # pre-cast MXU operands
        w2_bf16=w2.astype(jnp.bfloat16),
        b1_2d=b1.reshape(1, hidden).astype(jnp.float32),
        b2_2d=b2.reshape(1, dims).astype(jnp.float32),
    )


def apply_mlp(params, x, *, need_recon=True):
    return two_layer_mlp_pallas(x, params, need_recon=need_recon)


# ----------------------------------------------------------------------------
# A_llmrec_model computable pieces (glue around the Pallas kernels)
# ----------------------------------------------------------------------------
def get_item_emb(item_emb_table, mlp_params, item_ids):
    """self.recsys.model.item_emb(ids) -> self.mlp(...)[0]  (x1 is discarded)."""
    # TODO(synk): the embedding gather could be folded into the kernel with a
    # PrefetchScalarGridSpec row-gather once batch / table sizes grow.
    item_embs = jnp.take(item_emb_table, item_ids, axis=0)
    h, _ = apply_mlp(mlp_params, item_embs, need_recon=False)
    return h


def bce_with_logits(logits, targets):
    # torch.nn.BCEWithLogitsLoss (mean reduction)
    return jnp.mean(
        jnp.maximum(logits, 0.0) - logits * targets
        + jnp.log1p(jnp.exp(-jnp.abs(logits)))
    )


def mse(a, b):
    return jnp.mean((a - b) ** 2)


def calculate_losses_phase1(mlp_params, mlp2_params,
                            log_emb, pos_emb, neg_emb,
                            pos_text_emb, neg_text_emb):
    """Mirror of A_llmrec_model._calculate_losses (phase-1 alignment loss).

    pos/neg calls sharing MLP parameters are fused into one pallas_call each
    by concatenating along the batch axis; the text path only needs h, so it
    uses the h-only kernel.
    """
    B = pos_emb.shape[0]

    # self.mlp: both h (match loss) and x1 (recon loss) are used.
    item_cat = jnp.concatenate([pos_emb, neg_emb], axis=0)
    item_h, item_recon = apply_mlp(mlp_params, item_cat, need_recon=True)
    pos_emb_mlp, neg_emb_mlp = item_h[:B], item_h[B:]
    pos_recon, neg_recon = item_recon[:B], item_recon[B:]

    # self.mlp2: only h is used -> skip fc2 in-kernel.
    text_cat = jnp.concatenate([pos_text_emb, neg_text_emb], axis=0)
    text_h, _ = apply_mlp(mlp2_params, text_cat, need_recon=False)
    pos_text_mlp, neg_text_mlp = text_h[:B], text_h[B:]

    # TODO(synk): _bpr_loss is referenced but not defined in the provided source;
    # implemented here as the standard A-LLMRec BCE-with-logits on dot-product logits.
    pos_logits = jnp.sum(log_emb * pos_emb, axis=-1)
    neg_logits = jnp.sum(log_emb * neg_emb, axis=-1)
    bpr_loss = (bce_with_logits(pos_logits, jnp.ones_like(pos_logits)) +
                bce_with_logits(neg_logits, jnp.zeros_like(neg_logits)))

    match_loss = mse(pos_emb_mlp, pos_text_mlp) + mse(neg_emb_mlp, neg_text_mlp)
    recon_loss = mse(pos_recon, pos_emb) + mse(neg_recon, neg_emb)
    total_loss = bpr_loss + match_loss + 0.5 * recon_loss
    return total_loss


# ----------------------------------------------------------------------------
# Main
# ----------------------------------------------------------------------------
if __name__ == "__main__":
    key = jax.random.PRNGKey(0)

    # Module-consistent shapes (phase-1 inner batch_size is 60 in the source).
    rec_sys_dim = 64      # SASRec hidden_units
    sbert_dim = 768       # fixed in the module (self.sbert_dim = 768)
    hidden = 128          # two_layer_mlp bottleneck
    batch = 60            # phase-1 mini-batch
    item_num = 100

    (k_table, k_mlp, k_mlp2, k_log, k_pos, k_neg,
     k_ptxt, k_ntxt, k_ids) = jax.random.split(key, 9)

    # "Pretrained" recsys item embedding table and MLP params (synthetic).
    item_emb_table = jax.random.normal(k_table, (item_num, rec_sys_dim), jnp.float32)
    mlp_params = make_two_layer_mlp_params(k_mlp, rec_sys_dim, hidden)
    mlp2_params = make_two_layer_mlp_params(k_mlp2, sbert_dim, hidden)

    # Synthetic recsys / SBERT outputs standing in for the frozen encoders.
    log_emb = jax.random.normal(k_log, (batch, rec_sys_dim), jnp.float32)
    pos_emb = jax.random.normal(k_pos, (batch, rec_sys_dim), jnp.float32)
    neg_emb = jax.random.normal(k_neg, (batch, rec_sys_dim), jnp.float32)
    pos_text_emb = jax.random.normal(k_ptxt, (batch, sbert_dim), jnp.float32)
    neg_text_emb = jax.random.normal(k_ntxt, (batch, sbert_dim), jnp.float32)
    item_ids = jax.random.randint(k_ids, (batch,), 0, item_num)

    # get_item_emb path (embedding lookup -> Pallas h-only two_layer_mlp).
    item_embs = get_item_emb(item_emb_table, mlp_params, item_ids)
    item_embs = jax.block_until_ready(item_embs)
    assert item_embs.shape == (batch, hidden)

    # phase-1 loss path (all matmuls run through the Pallas kernels).
    loss = calculate_losses_phase1(mlp_params, mlp2_params,
                                   log_emb, pos_emb, neg_emb,
                                   pos_text_emb, neg_text_emb)
    loss = jax.block_until_ready(loss)

    # Correctness check against a pure-JAX f32 reference of two_layer_mlp.
    # Tolerance accounts for bf16 MXU operands (f32 accumulation).
    def ref_mlp(p, x):
        h = jax.nn.sigmoid(x @ p["w1"] + p["b1"])
        return h, h @ p["w2"] + p["b2"]

    for params, inp in ((mlp_params, pos_emb), (mlp2_params, pos_text_emb)):
        h_k, y_k = apply_mlp(params, inp, need_recon=True)
        h_r, y_r = ref_mlp(params, inp)
        assert h_k.shape == h_r.shape and y_k.shape == y_r.shape
        assert jnp.allclose(h_k, h_r, atol=1e-2, rtol=1e-2)
        assert jnp.allclose(y_k, y_r, atol=1e-2, rtol=1e-2)

        h_only, y_none = apply_mlp(params, inp, need_recon=False)
        assert y_none is None
        assert jnp.allclose(h_only, h_r, atol=1e-2, rtol=1e-2)

    assert jnp.isfinite(loss)

    print("KERNEL_OK")
</pallas_src>

<mosaic_0001>
module attributes {stable_mosaic.version = 11 : i64} {
  func.func @_mlp_h_only_kernel(%arg0: i32, %arg1: memref<60x64xf32, #tpu.memory_space<vmem>>, %arg2: memref<64x128xbf16, #tpu.memory_space<vmem>>, %arg3: memref<1x128xf32, #tpu.memory_space<vmem>>, %arg4: memref<60x128xf32, #tpu.memory_space<vmem>>) attributes {dimension_semantics = [#tpu.dimension_semantics<arbitrary>], iteration_bounds = array<i64: 1>, scalar_prefetch = 0 : i64, scratch_operands = 0 : i64, tpu.core_type = #tpu.core_type<tc>, window_params = [{transform_indices = @transform_0, window_bounds = array<i64: 60, 64>}, {pipeline_mode = #tpu.pipeline_mode<synchronous>, transform_indices = @transform_1, window_bounds = array<i64: 64, 128>}, {pipeline_mode = #tpu.pipeline_mode<synchronous>, transform_indices = @transform_2, window_bounds = array<i64: 1, 128>}, {transform_indices = @transform_3, window_bounds = array<i64: 60, 128>}]} {
    %c0 = arith.constant 0 : index
    %c0_0 = arith.constant 0 : index
    %0 = vector.load %arg1[%c0, %c0_0] : memref<60x64xf32, #tpu.memory_space<vmem>>, vector<60x64xf32>
    %1 = arith.truncf %0 : vector<60x64xf32> to vector<60x64xbf16>
    %c0_1 = arith.constant 0 : index
    %c0_2 = arith.constant 0 : index
    %2 = vector.load %arg2[%c0_1, %c0_2] : memref<64x128xbf16, #tpu.memory_space<vmem>>, vector<64x128xbf16>
    %cst = arith.constant dense<0.000000e+00> : vector<60x128xf32>
    %3 = tpu.matmul %1, %2, %cst {dimension_numbers = #tpu.dot_dimension_numbers<[1], [0], [0], [1], [0, 0, 1, 1], [], []>} : vector<60x64xbf16>, vector<64x128xbf16>, vector<60x128xf32> -> vector<60x128xf32>
    %c0_3 = arith.constant 0 : index
    %c0_4 = arith.constant 0 : index
    %4 = vector.load %arg3[%c0_3, %c0_4] : memref<1x128xf32, #tpu.memory_space<vmem>>, vector<1x128xf32>
    %5 = vector.broadcast %4 : vector<1x128xf32> to vector<60x128xf32>
    %6 = arith.addf %3, %5 : vector<60x128xf32>
    %cst_5 = arith.constant 5.000000e-01 : f32
    %7 = vector.broadcast %cst_5 : f32 to vector<60x128xf32>
    %8 = arith.mulf %7, %6 : vector<60x128xf32>
    %9 = math.tanh %8 : vector<60x128xf32>
    %cst_6 = arith.constant 5.000000e-01 : f32
    %10 = vector.broadcast %cst_6 : f32 to vector<60x128xf32>
    %11 = arith.mulf %10, %9 : vector<60x128xf32>
    %cst_7 = arith.constant 5.000000e-01 : f32
    %12 = vector.broadcast %cst_7 : f32 to vector<60x128xf32>
    %13 = arith.addf %11, %12 : vector<60x128xf32>
    %c0_8 = arith.constant 0 : index
    %c0_9 = arith.constant 0 : index
    %14 = vector.load %arg4[%c0_8, %c0_9] : memref<60x128xf32, #tpu.memory_space<vmem>>, vector<60x128xf32>
    tpu.vector_store %arg4[%c0_8, %c0_9], %13 {strides = array<i32>} : memref<60x128xf32, #tpu.memory_space<vmem>>, vector<60x128xf32>,
    return
  }
  func.func @transform_0(%arg0: i32) -> (i32, i32) {
    %c0_i32 = arith.constant 0 : i32
    %c0_i32_0 = arith.constant 0 : i32
    return %arg0, %c0_i32 : i32, i32
  }
  func.func @transform_1(%arg0: i32) -> (i32, i32) {
    %c0_i32 = arith.constant 0 : i32
    %c0_i32_0 = arith.constant 0 : i32
    %c0_i32_1 = arith.constant 0 : i32
    return %c0_i32, %c0_i32_0 : i32, i32
  }
  func.func @transform_2(%arg0: i32) -> (i32, i32) {
    %c0_i32 = arith.constant 0 : i32
    %c0_i32_0 = arith.constant 0 : i32
    %c0_i32_1 = arith.constant 0 : i32
    return %c0_i32, %c0_i32_0 : i32, i32
  }
  func.func @transform_3(%arg0: i32) -> (i32, i32) {
    %c0_i32 = arith.constant 0 : i32
    %c0_i32_0 = arith.constant 0 : i32
    return %arg0, %c0_i32 : i32, i32
  }
}

</mosaic_0001>

<llo_original>
// kernel: tpu_custom_call.1
$region0: #{tpu_custom_call.1}
  #allocation0 [shape = 'u32[]', space=smem, size = 0x4, offset = 0x4, fixed_abs, tag = 'smem constant byte address 0x4 - core index']
  #allocation1 [shape = 'u32[144,128]{1,0:T(1,128)}', space=vmem, size = 0x12000, scoped, tag = 'internal scratch']
  %s0 = inlined_call_operand.hbm [shape: f32[60,64], index: 0, kind: input, shape index: {}]
  %s1 = inlined_call_operand.hbm [shape: bf16[64,128], index: 1, kind: input, shape index: {}]
  %s2 = inlined_call_operand.vmem [shape: f32[1,128], index: 2, kind: input, shape index: {}]
  %s3 = inlined_call_operand.hbm [shape: f32[60,128], index: 3, kind: output, shape index: {}]
  %s4 = sld [smem:[#allocation0]]
  $region30: #{tpu_custom_call.1} parent=0
    _
  %s6 = ssub.s32 1, %s4
  %s7 = scalar_select 0, %s6, %s4
  $region1: #{tpu_custom_call.1} parent=0
    #allocation2 [shape = 'u8[32768]{0}', space=vmem, size = 0x8000, scoped, tag = 'input window, operand 0, single buffered']
    #allocation3 [shape = 's32[1]{0}', space=sflag, size = 0x4, scoped, tag = 'scoped memory for tpu_custom_call.1']
    #allocation4 [shape = 's32[1]{0}', space=sflag, size = 0x4, scoped, tag = 'scoped memory for tpu_custom_call.1']
    #allocation5 [shape = 'u8[16384]{0}', space=vmem, size = 0x4000, scoped, tag = 'input window, operand 1, single buffered']
    #allocation6 [shape = 's32[1]{0}', space=sflag, size = 0x4, scoped, tag = 'scoped memory for tpu_custom_call.1']
    #allocation7 [shape = 'u8[32768]{0}', space=vmem, size = 0x8000, scoped, tag = 'output window, operand 0, single buffered']
    %8 = vsyncpa [#allocation3], 0
    %9 = vsyncpa [#allocation6], 0
    %10 = vsyncpa [#allocation4], 0
    // Predicated region
    $region2: #{tpu_custom_call.1} parent=1 // pred_check
      _
    $region3: #{tpu_custom_call.1} parent=1 // pred_check_branch
      %12 = sbr.rel (0) target = $region5
    $region4: #{tpu_custom_call.1} parent=1 // pred_region
      %s14 = ssub.s32 1024, 1024
      %15 = vsyncadd [#allocation3], %s14
      %s16 = sshll.u32 [#allocation2], 4
      %s17 = int_to_ptr.vmem [resolvable:$true] %s16
      %22 = dma.hbm_to_vmem [thread:$0]  %s0, 1024, %s17, [#allocation3], 128, 128, 8
    $region5: #{tpu_custom_call.1} parent=1 // pred_fallthru
      _
    // Predicated region
    $region6: #{tpu_custom_call.1} parent=1 // pred_check
      _
    $region7: #{tpu_custom_call.1} parent=1 // pred_check_branch
      %24 = sbr.rel (0) target = $region9
    $region8: #{tpu_custom_call.1} parent=1 // pred_region
      %s26 = ssub.s32 512, 512
      %27 = vsyncadd [#allocation6], %s26
      %s28 = sshll.u32 [#allocation5], 4
      %s29 = int_to_ptr.vmem [resolvable:$true] %s28
      %34 = dma.hbm_to_vmem [thread:$0]  %s1, 512, %s29, [#allocation6], 64, 64, 4
    $region9: #{tpu_custom_call.1} parent=1 // pred_fallthru
      _
    // Predicated region
    $region10: #{tpu_custom_call.1} parent=1 // pred_check
      _
    $region11: #{tpu_custom_call.1} parent=1 // pred_check_branch
      %36 = sbr.rel (0) target = $region13
    $region12: #{tpu_custom_call.1} parent=1 // pred_region
      _
    $region13: #{tpu_custom_call.1} parent=1 // pred_fallthru
      _
    // Predicated region
    $region14: #{tpu_custom_call.1} parent=1 // pred_check
      _
    $region15: #{tpu_custom_call.1} parent=1 // pred_check_branch
      %38 = sbr.rel (0) target = $region17
    $region16: #{tpu_custom_call.1} parent=1 // pred_region
      %39 = dma.done [#allocation3], 1024
    $region17: #{tpu_custom_call.1} parent=1 // pred_fallthru
      _
    // Predicated region
    $region18: #{tpu_custom_call.1} parent=1 // pred_check
      _
    $region19: #{tpu_custom_call.1} parent=1 // pred_check_branch
      %41 = sbr.rel (0) target = $region21
    $region20: #{tpu_custom_call.1} parent=1 // pred_region
      %42 = dma.done [#allocation6], 512
    $region21: #{tpu_custom_call.1} parent=1 // pred_fallthru
      _
    %v44 = vld [vmem:[#allocation2] sm:$0xff]
    %v45 = vld [vmem:[#allocation2 + $0x8] sm:$0xff]
    %v46 = vld [vmem:[#allocation2 + $0x10] sm:$0xff]
    %v47 = vld [vmem:[#allocation2 + $0x18] sm:$0xff]
    %v48 = vld [vmem:[#allocation2 + $0x20] sm:$0xff]
    %v49 = vld [vmem:[#allocation2 + $0x28] sm:$0xff]
    %v50 = vld [vmem:[#allocation2 + $0x30] sm:$0xff]
    %v51 = vld [vmem:[#allocation2 + $0x38] sm:$0xf]
    %v52 = vpack.c.bf16 %v45, %v44
    %v53 = vpack.c.bf16 %v47, %v46
    %v54 = vpack.c.bf16 %v49, %v48
    %v55 = vpack.c.bf16 %v51, %v50
    %v56 = vld [vmem:[#allocation5] sm:$0xf]
    %v57 = vld [vmem:[#allocation5 + $0x4] sm:$0xf]
    %v58 = vld [vmem:[#allocation5 + $0x8] sm:$0xf]
    %v59 = vld [vmem:[#allocation5 + $0xc] sm:$0xf]
    %v60 = vld [vmem:[#allocation5 + $0x10] sm:$0xf]
    %v61 = vld [vmem:[#allocation5 + $0x14] sm:$0xf]
    %v62 = vld [vmem:[#allocation5 + $0x18] sm:$0xf]
    %v63 = vld [vmem:[#allocation5 + $0x1c] sm:$0xf]
    %v64 = vld [vmem:[%s2] sm:$0x1]
    %v66 = vlaneseq
    %v67 = vshrl.u32 %v66, 7
    %v68 = vsub.s32 0, %v67
    %v69 = vrot.slane %v64, %v68
    %v79 = vunpack.c.l.b16 %v56
    %v80 = vunpack.c.l.b16 %v57
    %v81 = vunpack.c.l.b16 %v58
    %v82 = vunpack.c.l.b16 %v59
    %v83 = vunpack.c.l.b16 %v60
    %v84 = vunpack.c.l.b16 %v61
    %v85 = vunpack.c.l.b16 %v62
    %v86 = vunpack.c.l.b16 %v63
    %v87 = vpack.c.b16 %v80, %v79
    %v88 = vpack.c.b16 %v82, %v81
    %v89 = vpack.c.b16 %v84, %v83
    %v90 = vpack.c.b16 %v86, %v85
    %vm95 = vcmask 523264
    %v97 = vsel %vm95, %v52, 0
    %v100 = vsel %vm95, %v53, 0
    %v103 = vsel %vm95, %v54, 0
    %v106 = vsel %vm95, %v55, 0
    %108 = vmatprep.subr.bf16.mxu0 0
    %109 = vmatpush1.bf16.msra.mxu0 0
    %110 = vmatprep.subr.bf16.mxu0 0
    %111 = vmatpush1.bf16.msra.mxu0 0
    %112 = vmatprep.subr.bf16.mxu0 0
    %113 = vmatpush1.bf16.msra.mxu0 0
    %114 = vmatprep.subr.bf16.mxu0 0
    %115 = vmatpush1.bf16.msra.mxu0 0
    %116 = vmatprep.subr.bf16.mxu0 0
    %117 = vmatpush1.bf16.msra.mxu0 %v90
    %118 = vmatprep.subr.bf16.mxu0 0
    %119 = vmatpush1.bf16.msra.mxu0 %v89
    %120 = vmatprep.subr.bf16.mxu0 0
    %121 = vmatpush1.bf16.msra.mxu0 %v88
    %122 = vmatprep.subr.bf16.mxu0 0
    %123 = vmatpush1.bf16.msra.mxu0 %v87
    %124 = vmatprep.subr.bf16.mxu0 0
    %125 = vmatpush2.bf16.msra.mxu0 0
    %126 = vmatprep.subr.bf16.mxu0 0
    %127 = vmatpush2.bf16.msra.mxu0 0
    %128 = vmatprep.subr.bf16.mxu0 0
    %129 = vmatpush2.bf16.msra.mxu0 0
    %130 = vmatprep.subr.bf16.mxu0 0
    %131 = vmatpush2.bf16.msra.mxu0 0
    %132 = vmatprep.subr.bf16.mxu0 0
    %133 = vmatpush2.bf16.msra.mxu0 0
    %134 = vmatprep.subr.bf16.mxu0 0
    %135 = vmatpush2.bf16.msra.mxu0 0
    %136 = vmatprep.subr.bf16.mxu0 0
    %137 = vmatpush2.bf16.msra.mxu0 0
    %138 = vmatprep.subr.bf16.mxu0 0
    %139 = vmatpush2.bf16.msra.mxu0 0
    %140 = vmatprep.mubr.bf16.mxu0 0
    %141 = vmatmul.mubr.bf16.gmra.mxu0 %v97
    %v142 = vpop.f32.mrf.mxu0
    %v143 = vadd.f32 %v69, %v142
    %v144 = vpop.f32.mrf.mxu0
    %v145 = vpop.f32.mrf.mxu0
    %v146 = vadd.f32 %v69, %v145
    %v147 = vpop.f32.mrf.mxu0
    %148 = vmatprep.mubr.bf16.mxu0 0
    %149 = vmatmul.mubr.bf16.gmra.mxu0 %v100
    %v150 = vpop.f32.mrf.mxu0
    %v151 = vadd.f32 %v69, %v150
    %v152 = vpop.f32.mrf.mxu0
    %v153 = vpop.f32.mrf.mxu0
    %v154 = vadd.f32 %v69, %v153
    %v155 = vpop.f32.mrf.mxu0
    %156 = vmatprep.mubr.bf16.mxu0 0
    %157 = vmatmul.mubr.bf16.gmra.mxu0 %v103
    %v158 = vpop.f32.mrf.mxu0
    %v159 = vadd.f32 %v69, %v158
    %v160 = vpop.f32.mrf.mxu0
    %v161 = vpop.f32.mrf.mxu0
    %v162 = vadd.f32 %v69, %v161
    %v163 = vpop.f32.mrf.mxu0
    %164 = vmatprep.mubr.bf16.mxu0 0
    %165 = vmatmul.mubr.bf16.gmra.mxu0 %v106
    %v166 = vpop.f32.mrf.mxu0
    %v167 = vadd.f32 %v69, %v166
    %v168 = vpop.f32.mrf.mxu0
    %v169 = vpop.f32.mrf.mxu0
    %v170 = vadd.f32 %v69, %v169
    %v171 = vpop.f32.mrf.mxu0
    %172 = vdwg.mxu0
    %v173 = vmul.f32 %v143, 0.5
    %v174 = vmul.f32 %v146, 0.5
    %v175 = vmul.f32 %v151, 0.5
    %v176 = vmul.f32 %v154, 0.5
    %v177 = vmul.f32 %v159, 0.5
    %v178 = vmul.f32 %v162, 0.5
    %v179 = vmul.f32 %v167, 0.5
    %v180 = vmul.f32 %v170, 0.5
    %v181 = vtanh.pop %v173
    %v182 = vtanh.pop %v174
    %v183 = vtanh.pop %v175
    %v184 = vtanh.pop %v176
    %v185 = vtanh.pop %v177
    %v186 = vtanh.pop %v178
    %v187 = vtanh.pop %v179
    %v188 = vtanh.pop %v180
    %v189 = vmul.f32 %v181, 0.5
    %v190 = vmul.f32 %v182, 0.5
    %v191 = vmul.f32 %v183, 0.5
    %v192 = vmul.f32 %v184, 0.5
    %v193 = vmul.f32 %v185, 0.5
    %v194 = vmul.f32 %v186, 0.5
    %v195 = vmul.f32 %v187, 0.5
    %v196 = vmul.f32 %v188, 0.5
    %v197 = vadd.f32 %v189, 0.5
    %v198 = vadd.f32 %v190, 0.5
    %v199 = vadd.f32 %v191, 0.5
    %v200 = vadd.f32 %v192, 0.5
    %v201 = vadd.f32 %v193, 0.5
    %v202 = vadd.f32 %v194, 0.5
    %v203 = vadd.f32 %v195, 0.5
    %v204 = vadd.f32 %v196, 0.5
    %205 = vst [vmem:[#allocation7] sm:$0xff] %v197
    %206 = vst [vmem:[#allocation7 + $0x8] sm:$0xff] %v198
    %207 = vst [vmem:[#allocation7 + $0x10] sm:$0xff] %v199
    %208 = vst [vmem:[#allocation7 + $0x18] sm:$0xff] %v200
    %209 = vst [vmem:[#allocation7 + $0x20] sm:$0xff] %v201
    %210 = vst [vmem:[#allocation7 + $0x28] sm:$0xff] %v202
    %211 = vst [vmem:[#allocation7 + $0x30] sm:$0xff] %v203
    %212 = vst [vmem:[#allocation7 + $0x38] sm:$0xf] %v204
    // Predicated region
    $region22: #{tpu_custom_call.1} parent=1 // pred_check
      _
    $region23: #{tpu_custom_call.1} parent=1 // pred_check_branch
      %214 = sbr.rel (0) target = $region25
    $region24: #{tpu_custom_call.1} parent=1 // pred_region
      %s216 = ssub.s32 1024, 1024
      %217 = vsyncadd [#allocation4], %s216
      %s218 = sshll.u32 [#allocation7], 4
      %s219 = int_to_ptr.vmem [resolvable:$true] %s218
      %224 = dma.vmem_to_hbm [thread:$0]  %s219, 1024, %s3, [#allocation4], 128, 128, 8
    $region25: #{tpu_custom_call.1} parent=1 // pred_fallthru
      _
    // Predicated region
    $region26: #{tpu_custom_call.1} parent=1 // pred_check
      _
    $region27: #{tpu_custom_call.1} parent=1 // pred_check_branch
      %226 = sbr.rel (0) target = $region29
    $region28: #{tpu_custom_call.1} parent=1 // pred_region
      %227 = dma.done [#allocation4], 1024
    $region29: #{tpu_custom_call.1} parent=1 // pred_fallthru
      _
    %228 = vsyncpa [#allocation3], 1
    %229 = vsyncpa [#allocation6], 1
    %230 = vsyncpa [#allocation4], 1

</llo_original>
